<compile_context>
chip_gen: v6e
topology: v6e:2x2x1
jax: 0.10.0
libtpu: 0.0.40
codegen_flags: <defaults>
</compile_context>

<pallas_src>
import math

import jax
import jax.numpy as jnp
from jax.experimental import pallas as pl
from jax.experimental.pallas import tpu as pltpu


def _round_up(x, m):
    return ((x + m - 1) // m) * m


def _vmem_budget_bytes():
    """~85% of physical VMEM (generation-aware); conservative 64 MiB fallback."""
    cap = None
    try:
        cap = getattr(pltpu.get_tpu_info(), "vmem_capacity_bytes", None)
    except Exception:
        cap = None
    if not cap:
        cap = 64 << 20
    return int(0.85 * cap)


def _mlp_fused_kernel(x_ref, w1_ref, b1_ref, w2_ref, b2_ref, o_ref):
    # Both weight matrices are VMEM-resident: one fused step per batch tile.
    h = jnp.dot(x_ref[...], w1_ref[...], preferred_element_type=jnp.float32)
    h = jnp.maximum(h + b1_ref[...], 0.0).astype(w2_ref.dtype)
    y = jnp.dot(h, w2_ref[...], preferred_element_type=jnp.float32)
    o_ref[...] = (y + b2_ref[...]).astype(o_ref.dtype)


def _mlp_cached_kernel(x_ref, w1_ref, b1_ref, w2_ref, b2_ref, o_ref, h_ref):
    # Layer-1 activations are computed once per batch tile (j == 0), cached in
    # VMEM scratch, and reused for every out_dim tile j while W2 streams.
    # CORRECTNESS INVARIANT: grid axis 1 (j) must stay the innermost,
    # sequentially-executed ("arbitrary") axis; if it were reordered or marked
    # "parallel", j > 0 tiles would read stale scratch.
    @pl.when(pl.program_id(1) == 0)
    def _():
        h = jnp.dot(x_ref[...], w1_ref[...], preferred_element_type=jnp.float32)
        h_ref[...] = jnp.maximum(h + b1_ref[...], 0.0).astype(h_ref.dtype)

    y = jnp.dot(h_ref[...], w2_ref[...], preferred_element_type=jnp.float32)
    o_ref[...] = (y + b2_ref[...]).astype(o_ref.dtype)


class VectorDecoderTPU:
    """ReLU(x @ W1 + b1) @ W2 + b2 on TPU via Pallas.

    Weights are padded / cast to lane-dense MXU tiles ONCE at construction
    (hoisted out of the per-call hot path).  Per call, x is padded only when it
    is not already tile-aligned; the whole forward (pad + kernel + slice) is
    jitted.
    """

    def __init__(self, w1, b1, w2, b2, *, compute_dtype=None,
                 block_batch=None, block_out=None):
        w1 = jnp.asarray(w1)
        w2 = jnp.asarray(w2)
        b1 = jnp.asarray(b1).reshape(1, -1)
        b2 = jnp.asarray(b2).reshape(1, -1)
        self.in_dim, self.hidden = w1.shape
        self.out_dim = w2.shape[1]
        self.block_batch = block_batch

        # bf16 is MXU-native on v6e/v7x (and helps v5e's MXU): default to it
        # for f32 weights.  Accumulation and bias adds remain f32.
        if compute_dtype is None:
            compute_dtype = jnp.bfloat16 if w1.dtype == jnp.float32 else w1.dtype
        cd = jnp.dtype(compute_dtype)

        self.budget = _vmem_budget_bytes()

        in_dim_p = _round_up(self.in_dim, 128)
        hidden_p = _round_up(self.hidden, 128)
        out_dim_p = _round_up(self.out_dim, 128)

        # Guard the resident-W1 assumption (matters on v7x's 64 MiB VMEM).
        if cd.itemsize == 4 and in_dim_p * hidden_p * 4 > 0.6 * self.budget:
            # TODO(synk): add a K-tiling grid axis over in_dim (with an f32
            # accumulator scratch) for a W1 that does not fit even in bf16.
            cd = jnp.dtype(jnp.bfloat16)

        cbytes = cd.itemsize
        sub = 8 if cbytes >= 4 else 16  # sublane multiple: f32 -> 8, bf16 -> 16
        self.compute_dtype, self.cbytes, self.sub = cd, cbytes, sub

        w1_bytes = in_dim_p * hidden_p * cbytes
        bias_bytes = 4 * (hidden_p + out_dim_p)

        # ---- W2 tiling: prefer a VMEM-resident W2 (avoids restreaming the
        # full W2 from HBM once per batch tile and removes (n_j-1) grid steps).
        if block_out is not None:
            tn = min(_round_up(block_out, 128), out_dim_p)
            resident_w2 = tn >= out_dim_p
        else:
            w2_res_bytes = hidden_p * out_dim_p * cbytes
            resident_w2 = (w1_bytes + w2_res_bytes + bias_bytes
                           <= 0.6 * self.budget)
            if resident_w2:
                tn = out_dim_p
            else:
                tn = min(out_dim_p, 512)
                if out_dim_p >= 256:
                    tn = _round_up(tn, 256)   # v6e/v7x MXU is 256x256
        if not resident_w2:
            out_dim_p = _round_up(out_dim_p, tn)

        self.in_dim_p, self.hidden_p, self.out_dim_p = in_dim_p, hidden_p, out_dim_p
        self.tn = tn
        self.resident_w2 = resident_w2
        self.n_j = out_dim_p // tn
        self.n_w2_bufs = 1 if resident_w2 else min(3, self.n_j)
        self.w1_bytes = w1_bytes
        self.bias_bytes = bias_bytes

        # ---- pad + cast parameters ONCE (zero padding cancels through both
        # matmuls; padded batch rows are sliced off after the kernel).
        self.w1_p = (jnp.zeros((in_dim_p, hidden_p), cd)
                     .at[:self.in_dim, :self.hidden].set(w1.astype(cd)))
        self.w2_p = (jnp.zeros((hidden_p, out_dim_p), cd)
                     .at[:self.hidden, :self.out_dim].set(w2.astype(cd)))
        self.b1_p = (jnp.zeros((1, hidden_p), jnp.float32)
                     .at[:, :self.hidden].set(b1.astype(jnp.float32)))
        self.b2_p = (jnp.zeros((1, out_dim_p), jnp.float32)
                     .at[:, :self.out_dim].set(b2.astype(jnp.float32)))

        self._forward_jit = jax.jit(self._forward)

    # ---- batch-tile heuristic ---------------------------------------------
    def _choose_bm(self, B, obytes):
        sub = self.sub
        streaming = not self.resident_w2
        per_row = (2 * self.in_dim_p * self.cbytes      # x tile (double buffered)
                   + 2 * self.tn * obytes               # out tile (double buffered)
                   + (self.hidden_p * self.cbytes if streaming else 0))  # h scratch
        fixed = (self.w1_bytes
                 + self.n_w2_bufs * self.hidden_p * self.tn * self.cbytes
                 + 2 * self.bias_bytes)
        avail = max(self.budget - fixed, per_row * sub)
        bm_cap = max(sub, (avail // per_row) // sub * sub)

        if self.block_batch is not None:
            bm = _round_up(self.block_batch, sub)
        elif B >= 1024:
            # Streamed W2 makes layer 2 W2-bandwidth bound -> bigger batch tiles.
            bm = 512 if streaming else 256
        elif B >= 4 * sub:
            # >= 4 batch tiles => >= 2 grid steps per TensorCore on v7x, so x
            # loads / output writebacks actually pipeline behind the MXU.
            bm = _round_up(pl.cdiv(B, 4), sub)
        else:
            bm = _round_up(max(B, 1), sub)
        return int(max(sub, min(bm, bm_cap, 1024)))

    # ---- forward ------------------------------------------------------------
    def _forward(self, x):
        B, in_dim = x.shape
        assert in_dim == self.in_dim, "input feature dim mismatch"
        out_dtype = x.dtype
        obytes = jnp.dtype(out_dtype).itemsize
        cd = self.compute_dtype

        bm = self._choose_bm(B, obytes)
        B_p = _round_up(B, bm)
        n_i = B_p // bm

        # Pad x only when needed (skipped entirely for tile-aligned inputs).
        if B_p != B or self.in_dim_p != in_dim:
            x_p = (jnp.zeros((B_p, self.in_dim_p), cd)
                   .at[:B, :in_dim].set(x.astype(cd)))
        else:
            x_p = x.astype(cd)

        single_buf = pl.Buffered(1)   # grid-invariant operands: no double-buffer
        if self.resident_w2:
            grid = (n_i,)
            in_specs = [
                pl.BlockSpec((bm, self.in_dim_p), lambda i: (i, 0)),
                pl.BlockSpec((self.in_dim_p, self.hidden_p), lambda i: (0, 0),
                             pipeline_mode=single_buf),
                pl.BlockSpec((1, self.hidden_p), lambda i: (0, 0),
                             pipeline_mode=single_buf),
                pl.BlockSpec((self.hidden_p, self.out_dim_p), lambda i: (0, 0),
                             pipeline_mode=single_buf),
                pl.BlockSpec((1, self.out_dim_p), lambda i: (0, 0),
                             pipeline_mode=single_buf),
            ]
            out_specs = pl.BlockSpec((bm, self.out_dim_p), lambda i: (i, 0))
            scratch = []
            kernel = _mlp_fused_kernel
            semantics = ("parallel",)
        else:
            w2_buf = pl.Buffered(self.n_w2_bufs)
            grid = (n_i, self.n_j)
            in_specs = [
                pl.BlockSpec((bm, self.in_dim_p), lambda i, j: (i, 0)),
                pl.BlockSpec((self.in_dim_p, self.hidden_p), lambda i, j: (0, 0),
                             pipeline_mode=single_buf),
                pl.BlockSpec((1, self.hidden_p), lambda i, j: (0, 0),
                             pipeline_mode=single_buf),
                pl.BlockSpec((self.hidden_p, self.tn), lambda i, j: (0, j),
                             pipeline_mode=w2_buf),
                pl.BlockSpec((1, self.tn), lambda i, j: (0, j),
                             pipeline_mode=w2_buf),
            ]
            out_specs = pl.BlockSpec((bm, self.tn), lambda i, j: (i, j))
            scratch = [pltpu.VMEM((bm, self.hidden_p), cd)]
            kernel = _mlp_cached_kernel
            # j (out_dim tiles) MUST stay innermost + "arbitrary": the cached
            # layer-1 activations in scratch depend on sequential j execution.
            semantics = ("parallel", "arbitrary")

        est = (2 * bm * self.in_dim_p * self.cbytes
               + self.w1_bytes
               + self.n_w2_bufs * self.hidden_p * self.tn * self.cbytes
               + 2 * bm * self.tn * obytes
               + (0 if self.resident_w2 else bm * self.hidden_p * self.cbytes)
               + 2 * self.bias_bytes)
        vmem_limit = int(min(self.budget,
                             max(32 << 20, int(1.25 * est) + (4 << 20))))

        w2_passes = 1 if self.resident_w2 else n_i
        cost = pl.CostEstimate(
            flops=(2 * B_p * self.in_dim_p * self.hidden_p
                   + 2 * B_p * self.hidden_p * self.out_dim_p),
            transcendentals=0,
            bytes_accessed=(x_p.size * self.cbytes
                            + self.w1_p.size * self.cbytes
                            + w2_passes * self.w2_p.size * self.cbytes
                            + self.b1_p.size * 4 + self.b2_p.size * 4
                            + B_p * self.out_dim_p * obytes),
        )

        out_p = pl.pallas_call(
            kernel,
            out_shape=jax.ShapeDtypeStruct((B_p, self.out_dim_p), out_dtype),
            grid_spec=pltpu.PrefetchScalarGridSpec(
                num_scalar_prefetch=0,
                grid=grid,
                in_specs=in_specs,
                out_specs=out_specs,
                scratch_shapes=scratch,
            ),
            compiler_params=pltpu.CompilerParams(
                dimension_semantics=semantics,
                vmem_limit_bytes=vmem_limit,
            ),
            cost_estimate=cost,
        )(x_p, self.w1_p, self.b1_p, self.w2_p, self.b2_p)

        # TODO(synk): for out_dim <= ~32 with very large B, benchmark a masked-
        # store (unpadded out_dim) variant against this lane-dense padded path.
        return out_p[:B, :self.out_dim]

    def __call__(self, x):
        return self._forward_jit(x)


def vector_decoder(x, w1, b1, w2, b2, **kwargs):
    """One-shot convenience wrapper.  For repeated calls, construct
    VectorDecoderTPU once so weight padding/casting stays out of the hot path."""
    return VectorDecoderTPU(w1, b1, w2, b2, **kwargs)(x)


def init_params(key, in_dim, hidden_dim, out_dim, dtype=jnp.float32):
    """Deterministic init mimicking nn.Linear's U(-1/sqrt(fan_in), 1/sqrt(fan_in))."""
    k1, k2, k3, k4 = jax.random.split(key, 4)
    lim1 = 1.0 / math.sqrt(in_dim)
    lim2 = 1.0 / math.sqrt(hidden_dim)
    w1 = jax.random.uniform(k1, (in_dim, hidden_dim), dtype, -lim1, lim1)
    b1 = jax.random.uniform(k2, (1, hidden_dim), dtype, -lim1, lim1)
    w2 = jax.random.uniform(k3, (hidden_dim, out_dim), dtype, -lim2, lim2)
    b2 = jax.random.uniform(k4, (1, out_dim), dtype, -lim2, lim2)
    return w1, b1, w2, b2


def _ref(x, w1, b1, w2, b2):
    return jnp.maximum(x @ w1 + b1, 0.0) @ w2 + b2


if __name__ == "__main__":
    key = jax.random.PRNGKey(0)
    kx, kp, kx2, kp2 = jax.random.split(key, 4)

    # Test 1: the module's natural small shapes, f32 compute (tight tolerance),
    # resident-W2 fused kernel; second call reuses the pre-padded weights.
    B, in_dim, hidden_dim, out_dim = 8, 16, 32, 8
    x = jax.random.normal(kx, (B, in_dim), dtype=jnp.float32)
    w1, b1, w2, b2 = init_params(kp, in_dim, hidden_dim, out_dim)
    dec = VectorDecoderTPU(w1, b1, w2, b2, compute_dtype=jnp.float32)
    out = jax.block_until_ready(dec(x))
    ref = _ref(x, w1, b1, w2, b2)
    assert out.shape == (B, out_dim)
    assert jnp.allclose(out, ref, atol=1e-4, rtol=1e-4), \
        float(jnp.max(jnp.abs(out - ref)))
    out_again = jax.block_until_ready(dec(x))   # hot path: no weight re-padding
    assert jnp.allclose(out_again, ref, atol=1e-4, rtol=1e-4)

    # Test 2: non-divisible batch/out_dim with streamed W2 (cached-activation
    # kernel, Buffered W2 tiles) using the default bf16 MXU path (f32 accum),
    # hence the looser tolerance vs. the f32 reference.
    B2, in2, hid2, outd2 = 40, 20, 48, 200
    x2 = jax.random.normal(kx2, (B2, in2), dtype=jnp.float32)
    p2 = init_params(kp2, in2, hid2, outd2)
    dec2 = VectorDecoderTPU(*p2, block_batch=16, block_out=128)
    out2 = jax.block_until_ready(dec2(x2))
    ref2 = _ref(x2, *p2)
    assert out2.shape == (B2, outd2)
    assert jnp.allclose(out2, ref2, atol=5e-2, rtol=5e-2), \
        float(jnp.max(jnp.abs(out2 - ref2)))

    print("KERNEL_OK")
</pallas_src>

<mosaic_0001>
module attributes {stable_mosaic.version = 11 : i64} {
  func.func @_mlp_fused_kernel(%arg0: i32, %arg1: memref<8x128xf32, #tpu.memory_space<vmem>>, %arg2: memref<128x128xf32, #tpu.memory_space<vmem>>, %arg3: memref<1x128xf32, #tpu.memory_space<vmem>>, %arg4: memref<128x128xf32, #tpu.memory_space<vmem>>, %arg5: memref<1x128xf32, #tpu.memory_space<vmem>>, %arg6: memref<8x128xf32, #tpu.memory_space<vmem>>) attributes {dimension_semantics = [#tpu.dimension_semantics<parallel>], iteration_bounds = array<i64: 1>, scalar_prefetch = 0 : i64, scratch_operands = 0 : i64, tpu.core_type = #tpu.core_type<tc>, window_params = [{transform_indices = @transform_0, window_bounds = array<i64: 8, 128>}, {pipeline_mode = #tpu.pipeline_mode<synchronous>, transform_indices = @transform_1, window_bounds = array<i64: 128, 128>}, {pipeline_mode = #tpu.pipeline_mode<synchronous>, transform_indices = @transform_2, window_bounds = array<i64: 1, 128>}, {pipeline_mode = #tpu.pipeline_mode<synchronous>, transform_indices = @transform_3, window_bounds = array<i64: 128, 128>}, {pipeline_mode = #tpu.pipeline_mode<synchronous>, transform_indices = @transform_4, window_bounds = array<i64: 1, 128>}, {transform_indices = @transform_5, window_bounds = array<i64: 8, 128>}]} {
    %c0 = arith.constant 0 : index
    %c0_0 = arith.constant 0 : index
    %0 = vector.load %arg1[%c0, %c0_0] : memref<8x128xf32, #tpu.memory_space<vmem>>, vector<8x128xf32>
    %c0_1 = arith.constant 0 : index
    %c0_2 = arith.constant 0 : index
    %1 = vector.load %arg2[%c0_1, %c0_2] : memref<128x128xf32, #tpu.memory_space<vmem>>, vector<128x128xf32>
    %cst = arith.constant dense<0.000000e+00> : vector<8x128xf32>
    %2 = tpu.matmul %0, %1, %cst {dimension_numbers = #tpu.dot_dimension_numbers<[1], [0], [0], [1], [0, 0, 1, 1], [], []>} : vector<8x128xf32>, vector<128x128xf32>, vector<8x128xf32> -> vector<8x128xf32>
    %c0_3 = arith.constant 0 : index
    %c0_4 = arith.constant 0 : index
    %3 = vector.load %arg3[%c0_3, %c0_4] : memref<1x128xf32, #tpu.memory_space<vmem>>, vector<1x128xf32>
    %4 = vector.broadcast %3 : vector<1x128xf32> to vector<8x128xf32>
    %5 = arith.addf %2, %4 : vector<8x128xf32>
    %cst_5 = arith.constant 0.000000e+00 : f32
    %6 = vector.broadcast %cst_5 : f32 to vector<8x128xf32>
    %7 = arith.maximumf %5, %6 : vector<8x128xf32>
    %c0_6 = arith.constant 0 : index
    %c0_7 = arith.constant 0 : index
    %8 = vector.load %arg4[%c0_6, %c0_7] : memref<128x128xf32, #tpu.memory_space<vmem>>, vector<128x128xf32>
    %cst_8 = arith.constant dense<0.000000e+00> : vector<8x128xf32>
    %9 = tpu.matmul %7, %8, %cst_8 {dimension_numbers = #tpu.dot_dimension_numbers<[1], [0], [0], [1], [0, 0, 1, 1], [], []>} : vector<8x128xf32>, vector<128x128xf32>, vector<8x128xf32> -> vector<8x128xf32>
    %c0_9 = arith.constant 0 : index
    %c0_10 = arith.constant 0 : index
    %10 = vector.load %arg5[%c0_9, %c0_10] : memref<1x128xf32, #tpu.memory_space<vmem>>, vector<1x128xf32>
    %11 = vector.broadcast %10 : vector<1x128xf32> to vector<8x128xf32>
    %12 = arith.addf %9, %11 : vector<8x128xf32>
    %c0_11 = arith.constant 0 : index
    %c0_12 = arith.constant 0 : index
    %13 = vector.load %arg6[%c0_11, %c0_12] : memref<8x128xf32, #tpu.memory_space<vmem>>, vector<8x128xf32>
    tpu.vector_store %arg6[%c0_11, %c0_12], %12 {strides = array<i32>} : memref<8x128xf32, #tpu.memory_space<vmem>>, vector<8x128xf32>,
    return
  }
  func.func @transform_0(%arg0: i32) -> (i32, i32) {
    %c0_i32 = arith.constant 0 : i32
    %c0_i32_0 = arith.constant 0 : i32
    return %arg0, %c0_i32 : i32, i32
  }
  func.func @transform_1(%arg0: i32) -> (i32, i32) {
    %c0_i32 = arith.constant 0 : i32
    %c0_i32_0 = arith.constant 0 : i32
    %c0_i32_1 = arith.constant 0 : i32
    return %c0_i32, %c0_i32_0 : i32, i32
  }
  func.func @transform_2(%arg0: i32) -> (i32, i32) {
    %c0_i32 = arith.constant 0 : i32
    %c0_i32_0 = arith.constant 0 : i32
    %c0_i32_1 = arith.constant 0 : i32
    return %c0_i32, %c0_i32_0 : i32, i32
  }
  func.func @transform_3(%arg0: i32) -> (i32, i32) {
    %c0_i32 = arith.constant 0 : i32
    %c0_i32_0 = arith.constant 0 : i32
    %c0_i32_1 = arith.constant 0 : i32
    return %c0_i32, %c0_i32_0 : i32, i32
  }
  func.func @transform_4(%arg0: i32) -> (i32, i32) {
    %c0_i32 = arith.constant 0 : i32
    %c0_i32_0 = arith.constant 0 : i32
    %c0_i32_1 = arith.constant 0 : i32
    return %c0_i32, %c0_i32_0 : i32, i32
  }
  func.func @transform_5(%arg0: i32) -> (i32, i32) {
    %c0_i32 = arith.constant 0 : i32
    %c0_i32_0 = arith.constant 0 : i32
    return %arg0, %c0_i32 : i32, i32
  }
}

</mosaic_0001>

<llo_original>
// kernel: _forward.1
$region0: #{_forward.1}
  #allocation0 [shape = 'u32[]', space=smem, size = 0x4, offset = 0x4, fixed_abs, tag = 'smem constant byte address 0x4 - core index']
  #allocation1 [shape = 'u32[144,128]{1,0:T(1,128)}', space=vmem, size = 0x12000, scoped, tag = 'internal scratch']
  %s0 = inlined_call_operand.vmem [shape: f32[8,128], index: 0, kind: input, shape index: {}]
  %s1 = inlined_call_operand.hbm [shape: f32[128,128], index: 1, kind: input, shape index: {}]
  %s2 = inlined_call_operand.vmem [shape: f32[1,128], index: 2, kind: input, shape index: {}]
  %s3 = inlined_call_operand.hbm [shape: f32[128,128], index: 3, kind: input, shape index: {}]
  %s4 = inlined_call_operand.vmem [shape: f32[1,128], index: 4, kind: input, shape index: {}]
  %s5 = inlined_call_operand.hbm [shape: f32[8,128], index: 5, kind: output, shape index: {}]
  %s6 = sld [smem:[#allocation0]]
  $region38: #{_forward.1} parent=0
    _
  %s8 = ssub.s32 1, %s6
  %s9 = scalar_select 0, %s8, %s6
  $region1: #{_forward.1} parent=0
    #allocation2 [shape = 'u8[65536]{0}', space=vmem, size = 0x10000, scoped, tag = 'input window, operand 1, single buffered']
    #allocation3 [shape = 's32[1]{0}', space=sflag, size = 0x4, scoped, tag = 'scoped memory for _forward.1']
    #allocation4 [shape = 's32[1]{0}', space=sflag, size = 0x4, scoped, tag = 'scoped memory for _forward.1']
    #allocation5 [shape = 'u8[65536]{0}', space=vmem, size = 0x10000, scoped, tag = 'input window, operand 3, single buffered']
    #allocation6 [shape = 's32[1]{0}', space=sflag, size = 0x4, scoped, tag = 'scoped memory for _forward.1']
    #allocation7 [shape = 'u8[4096]{0}', space=vmem, size = 0x1000, scoped, tag = 'output window, operand 0, single buffered']
    %10 = vsyncpa [#allocation3], 0
    %11 = vsyncpa [#allocation6], 0
    %12 = vsyncpa [#allocation4], 0
    // Predicated region
    $region2: #{_forward.1} parent=1 // pred_check
      _
    $region3: #{_forward.1} parent=1 // pred_check_branch
      %14 = sbr.rel (0) target = $region5
    $region4: #{_forward.1} parent=1 // pred_region
      _
    $region5: #{_forward.1} parent=1 // pred_fallthru
      _
    // Predicated region
    $region6: #{_forward.1} parent=1 // pred_check
      _
    $region7: #{_forward.1} parent=1 // pred_check_branch
      %16 = sbr.rel (0) target = $region9
    $region8: #{_forward.1} parent=1 // pred_region
      %s18 = ssub.s32 2048, 2048
      %19 = vsyncadd [#allocation3], %s18
      %s20 = sshll.u32 [#allocation2], 4
      %s21 = int_to_ptr.vmem [resolvable:$true] %s20
      %26 = dma.hbm_to_vmem [thread:$0]  %s1, 2048, %s21, [#allocation3], 128, 128, 8
    $region9: #{_forward.1} parent=1 // pred_fallthru
      _
    // Predicated region
    $region10: #{_forward.1} parent=1 // pred_check
      _
    $region11: #{_forward.1} parent=1 // pred_check_branch
      %28 = sbr.rel (0) target = $region13
    $region12: #{_forward.1} parent=1 // pred_region
      _
    $region13: #{_forward.1} parent=1 // pred_fallthru
      _
    // Predicated region
    $region14: #{_forward.1} parent=1 // pred_check
      _
    $region15: #{_forward.1} parent=1 // pred_check_branch
      %30 = sbr.rel (0) target = $region17
    $region16: #{_forward.1} parent=1 // pred_region
      %s32 = ssub.s32 2048, 2048
      %33 = vsyncadd [#allocation6], %s32
      %s34 = sshll.u32 [#allocation5], 4
      %s35 = int_to_ptr.vmem [resolvable:$true] %s34
      %40 = dma.hbm_to_vmem [thread:$0]  %s3, 2048, %s35, [#allocation6], 128, 128, 8
    $region17: #{_forward.1} parent=1 // pred_fallthru
      _
    // Predicated region
    $region18: #{_forward.1} parent=1 // pred_check
      _
    $region19: #{_forward.1} parent=1 // pred_check_branch
      %42 = sbr.rel (0) target = $region21
    $region20: #{_forward.1} parent=1 // pred_region
      _
    $region21: #{_forward.1} parent=1 // pred_fallthru
      _
    // Predicated region
    $region22: #{_forward.1} parent=1 // pred_check
      _
    $region23: #{_forward.1} parent=1 // pred_check_branch
      %44 = sbr.rel (0) target = $region25
    $region24: #{_forward.1} parent=1 // pred_region
      %45 = dma.done [#allocation3], 2048
    $region25: #{_forward.1} parent=1 // pred_fallthru
      _
    // Predicated region
    $region26: #{_forward.1} parent=1 // pred_check
      _
    $region27: #{_forward.1} parent=1 // pred_check_branch
      %47 = sbr.rel (0) target = $region29
    $region28: #{_forward.1} parent=1 // pred_region
      %48 = dma.done [#allocation6], 2048
    $region29: #{_forward.1} parent=1 // pred_fallthru
      _
    %v49 = vld [vmem:[%s0] sm:$0xff]
    %v50 = vld [vmem:[#allocation2] sm:$0xff]
    %v51 = vld [vmem:[#allocation2 + $0x8] sm:$0xff]
    %v52 = vld [vmem:[#allocation2 + $0x10] sm:$0xff]
    %v53 = vld [vmem:[#allocation2 + $0x18] sm:$0xff]
    %v54 = vld [vmem:[#allocation2 + $0x20] sm:$0xff]
    %v55 = vld [vmem:[#allocation2 + $0x28] sm:$0xff]
    %v56 = vld [vmem:[#allocation2 + $0x30] sm:$0xff]
    %v57 = vld [vmem:[#allocation2 + $0x38] sm:$0xff]
    %v58 = vld [vmem:[#allocation2 + $0x40] sm:$0xff]
    %v59 = vld [vmem:[#allocation2 + $0x48] sm:$0xff]
    %v60 = vld [vmem:[#allocation2 + $0x50] sm:$0xff]
    %v61 = vld [vmem:[#allocation2 + $0x58] sm:$0xff]
    %v62 = vld [vmem:[#allocation2 + $0x60] sm:$0xff]
    %v63 = vld [vmem:[#allocation2 + $0x68] sm:$0xff]
    %v64 = vld [vmem:[#allocation2 + $0x70] sm:$0xff]
    %v65 = vld [vmem:[#allocation2 + $0x78] sm:$0xff]
    %v66 = vld [vmem:[%s2] sm:$0x1]
    %v68 = vlaneseq
    %v69 = vshrl.u32 %v68, 7
    %v70 = vsub.s32 0, %v69
    %v71 = vrot.slane %v66, %v70
    %73 = vmatprep.subr.mxu0 0.0
    %74 = vmatpush1.msra.mxu0 %v65
    %75 = vmatprep.subr.mxu0 0.0
    %76 = vmatpush1.msra.mxu0 %v64
    %77 = vmatprep.subr.mxu0 0.0
    %78 = vmatpush1.msra.mxu0 %v63
    %79 = vmatprep.subr.mxu0 0.0
    %80 = vmatpush1.msra.mxu0 %v62
    %81 = vmatprep.subr.mxu0 0.0
    %82 = vmatpush1.msra.mxu0 %v61
    %83 = vmatprep.subr.mxu0 0.0
    %84 = vmatpush1.msra.mxu0 %v60
    %85 = vmatprep.subr.mxu0 0.0
    %86 = vmatpush1.msra.mxu0 %v59
    %87 = vmatprep.subr.mxu0 0.0
    %88 = vmatpush1.msra.mxu0 %v58
    %89 = vmatprep.subr.mxu0 0.0
    %90 = vmatpush1.msra.mxu0 %v57
    %91 = vmatprep.subr.mxu0 0.0
    %92 = vmatpush1.msra.mxu0 %v56
    %93 = vmatprep.subr.mxu0 0.0
    %94 = vmatpush1.msra.mxu0 %v55
    %95 = vmatprep.subr.mxu0 0.0
    %96 = vmatpush1.msra.mxu0 %v54
    %97 = vmatprep.subr.mxu0 0.0
    %98 = vmatpush1.msra.mxu0 %v53
    %99 = vmatprep.subr.mxu0 0.0
    %100 = vmatpush1.msra.mxu0 %v52
    %101 = vmatprep.subr.mxu0 0.0
    %102 = vmatpush1.msra.mxu0 %v51
    %103 = vmatprep.subr.mxu0 0.0
    %104 = vmatpush1.msra.mxu0 %v50
    %105 = vmatprep.subr.mxu0 0.0
    %106 = vmatpush2.msra.mxu0 0.0
    %107 = vmatprep.subr.mxu0 0.0
    %108 = vmatpush2.msra.mxu0 0.0
    %109 = vmatprep.subr.mxu0 0.0
    %110 = vmatpush2.msra.mxu0 0.0
    %111 = vmatprep.subr.mxu0 0.0
    %112 = vmatpush2.msra.mxu0 0.0
    %113 = vmatprep.subr.mxu0 0.0
    %114 = vmatpush2.msra.mxu0 0.0
    %115 = vmatprep.subr.mxu0 0.0
    %116 = vmatpush2.msra.mxu0 0.0
    %117 = vmatprep.subr.mxu0 0.0
    %118 = vmatpush2.msra.mxu0 0.0
    %119 = vmatprep.subr.mxu0 0.0
    %120 = vmatpush2.msra.mxu0 0.0
    %121 = vmatprep.subr.mxu0 0.0
    %122 = vmatpush2.msra.mxu0 0.0
    %123 = vmatprep.subr.mxu0 0.0
    %124 = vmatpush2.msra.mxu0 0.0
    %125 = vmatprep.subr.mxu0 0.0
    %126 = vmatpush2.msra.mxu0 0.0
    %127 = vmatprep.subr.mxu0 0.0
    %128 = vmatpush2.msra.mxu0 0.0
    %129 = vmatprep.subr.mxu0 0.0
    %130 = vmatpush2.msra.mxu0 0.0
    %131 = vmatprep.subr.mxu0 0.0
    %132 = vmatpush2.msra.mxu0 0.0
    %133 = vmatprep.subr.mxu0 0.0
    %134 = vmatpush2.msra.mxu0 0.0
    %135 = vmatprep.subr.mxu0 0.0
    %136 = vmatpush2.msra.mxu0 0.0
    %137 = vmatprep.mubr.f32.mxu0 0.0
    %138 = vmatmul.mubr.f32.gmra.mxu0 %v49
    %v139 = vpop.f32.mrf.mxu0
    %v140 = vadd.f32 %v71, %v139
    %v141 = vpop.f32.mrf.mxu0
    %142 = vdwg.mxu0
    %v143 = vmax.f32 %v140, 0.0
    %v144 = vld [vmem:[#allocation5] sm:$0xff]
    %v145 = vld [vmem:[#allocation5 + $0x8] sm:$0xff]
    %v146 = vld [vmem:[#allocation5 + $0x10] sm:$0xff]
    %v147 = vld [vmem:[#allocation5 + $0x18] sm:$0xff]
    %v148 = vld [vmem:[#allocation5 + $0x20] sm:$0xff]
    %v149 = vld [vmem:[#allocation5 + $0x28] sm:$0xff]
    %v150 = vld [vmem:[#allocation5 + $0x30] sm:$0xff]
    %v151 = vld [vmem:[#allocation5 + $0x38] sm:$0xff]
    %v152 = vld [vmem:[#allocation5 + $0x40] sm:$0xff]
    %v153 = vld [vmem:[#allocation5 + $0x48] sm:$0xff]
    %v154 = vld [vmem:[#allocation5 + $0x50] sm:$0xff]
    %v155 = vld [vmem:[#allocation5 + $0x58] sm:$0xff]
    %v156 = vld [vmem:[#allocation5 + $0x60] sm:$0xff]
    %v157 = vld [vmem:[#allocation5 + $0x68] sm:$0xff]
    %v158 = vld [vmem:[#allocation5 + $0x70] sm:$0xff]
    %v159 = vld [vmem:[#allocation5 + $0x78] sm:$0xff]
    %v160 = vld [vmem:[%s4] sm:$0x1]
    %v162 = vlaneseq
    %v163 = vshrl.u32 %v162, 7
    %v164 = vsub.s32 0, %v163
    %v165 = vrot.slane %v160, %v164
    %167 = vmatprep.subr.mxu0 0.0
    %168 = vmatpush1.msra.mxu0 %v159
    %169 = vmatprep.subr.mxu0 0.0
    %170 = vmatpush1.msra.mxu0 %v158
    %171 = vmatprep.subr.mxu0 0.0
    %172 = vmatpush1.msra.mxu0 %v157
    %173 = vmatprep.subr.mxu0 0.0
    %174 = vmatpush1.msra.mxu0 %v156
    %175 = vmatprep.subr.mxu0 0.0
    %176 = vmatpush1.msra.mxu0 %v155
    %177 = vmatprep.subr.mxu0 0.0
    %178 = vmatpush1.msra.mxu0 %v154
    %179 = vmatprep.subr.mxu0 0.0
    %180 = vmatpush1.msra.mxu0 %v153
    %181 = vmatprep.subr.mxu0 0.0
    %182 = vmatpush1.msra.mxu0 %v152
    %183 = vmatprep.subr.mxu0 0.0
    %184 = vmatpush1.msra.mxu0 %v151
    %185 = vmatprep.subr.mxu0 0.0
    %186 = vmatpush1.msra.mxu0 %v150
    %187 = vmatprep.subr.mxu0 0.0
    %188 = vmatpush1.msra.mxu0 %v149
    %189 = vmatprep.subr.mxu0 0.0
    %190 = vmatpush1.msra.mxu0 %v148
    %191 = vmatprep.subr.mxu0 0.0
    %192 = vmatpush1.msra.mxu0 %v147
    %193 = vmatprep.subr.mxu0 0.0
    %194 = vmatpush1.msra.mxu0 %v146
    %195 = vmatprep.subr.mxu0 0.0
    %196 = vmatpush1.msra.mxu0 %v145
    %197 = vmatprep.subr.mxu0 0.0
    %198 = vmatpush1.msra.mxu0 %v144
    %199 = vmatprep.subr.mxu0 0.0
    %200 = vmatpush2.msra.mxu0 0.0
    %201 = vmatprep.subr.mxu0 0.0
    %202 = vmatpush2.msra.mxu0 0.0
    %203 = vmatprep.subr.mxu0 0.0
    %204 = vmatpush2.msra.mxu0 0.0
    %205 = vmatprep.subr.mxu0 0.0
    %206 = vmatpush2.msra.mxu0 0.0
    %207 = vmatprep.subr.mxu0 0.0
    %208 = vmatpush2.msra.mxu0 0.0
    %209 = vmatprep.subr.mxu0 0.0
    %210 = vmatpush2.msra.mxu0 0.0
    %211 = vmatprep.subr.mxu0 0.0
    %212 = vmatpush2.msra.mxu0 0.0
    %213 = vmatprep.subr.mxu0 0.0
    %214 = vmatpush2.msra.mxu0 0.0
    %215 = vmatprep.subr.mxu0 0.0
    %216 = vmatpush2.msra.mxu0 0.0
    %217 = vmatprep.subr.mxu0 0.0
    %218 = vmatpush2.msra.mxu0 0.0
    %219 = vmatprep.subr.mxu0 0.0
    %220 = vmatpush2.msra.mxu0 0.0
    %221 = vmatprep.subr.mxu0 0.0
    %222 = vmatpush2.msra.mxu0 0.0
    %223 = vmatprep.subr.mxu0 0.0
    %224 = vmatpush2.msra.mxu0 0.0
    %225 = vmatprep.subr.mxu0 0.0
    %226 = vmatpush2.msra.mxu0 0.0
    %227 = vmatprep.subr.mxu0 0.0
    %228 = vmatpush2.msra.mxu0 0.0
    %229 = vmatprep.subr.mxu0 0.0
    %230 = vmatpush2.msra.mxu0 0.0
    %231 = vmatprep.mubr.f32.mxu0 0.0
    %232 = vmatmul.mubr.f32.gmra.mxu0 %v143
    %v233 = vpop.f32.mrf.mxu0
    %v234 = vadd.f32 %v165, %v233
    %v235 = vpop.f32.mrf.mxu0
    %236 = vdwg.mxu0
    %237 = vst [vmem:[#allocation7] sm:$0xff] %v234
    // Predicated region
    $region30: #{_forward.1} parent=1 // pred_check
      _
    $region31: #{_forward.1} parent=1 // pred_check_branch
      %239 = sbr.rel (0) target = $region33
    $region32: #{_forward.1} parent=1 // pred_region
      %s241 = ssub.s32 128, 128
      %242 = vsyncadd [#allocation4], %s241
      %s244 = sshll.u32 [#allocation7], 4
      %s245 = int_to_ptr.vmem [resolvable:$true] %s244
      %247 = dma.vmem_to_hbm [thread:$0]  %s245, 128, %s5, [#allocation4]
    $region33: #{_forward.1} parent=1 // pred_fallthru
      _
    // Predicated region
    $region34: #{_forward.1} parent=1 // pred_check
      _
    $region35: #{_forward.1} parent=1 // pred_check_branch
      %249 = sbr.rel (0) target = $region37
    $region36: #{_forward.1} parent=1 // pred_region
      %250 = dma.done [#allocation4], 128
    $region37: #{_forward.1} parent=1 // pred_fallthru
      _
    %251 = vsyncpa [#allocation3], 1
    %252 = vsyncpa [#allocation6], 1
    %253 = vsyncpa [#allocation4], 1

</llo_original>
